<compile_context>
chip_gen: v7x
topology: tpu7x:2x2x1
jax: 0.10.0
libtpu: 0.0.40
codegen_flags: <defaults>
</compile_context>

<pallas_src>
import functools

import jax
import jax.numpy as jnp
from jax.experimental import pallas as pl
from jax.experimental.pallas import tpu as pltpu


def _ln_packed_kernel(x_ref, seg_ref, a_ref, b_ref, o_ref, *, eps, size):
    """Lane-dense path. x_ref: (TR, 128) with 128//size logical rows packed per
    physical row; seg_ref: (128, 128) bf16 block-diagonal 0/1 matrix (hoisted
    out of the kernel); a_ref/b_ref: (1, 128) params tiled pack times."""
    f32 = jnp.float32
    x = x_ref[...].astype(f32)
    seg = seg_ref[...]            # exact 0/1 values in bf16

    def seg_sum(v):
        # Segmented lane-sum on the MXU. The hi/lo bf16 split makes the
        # products exact (seg is 0/1) and accumulation is f32, so accuracy is
        # ~f32 without any f32-matmul precision mode.
        # TODO(synk): v5e-only option — fuse into a single pass via
        # var = (sum(x^2) - N*mean^2)/(N-1) to halve MXU work (kept two-pass
        # here for numerical robustness when |mean| >> std).
        hi = v.astype(jnp.bfloat16)
        lo = (v - hi.astype(f32)).astype(jnp.bfloat16)
        return (jnp.dot(hi, seg, preferred_element_type=f32)
                + jnp.dot(lo, seg, preferred_element_type=f32))

    mean = seg_sum(x) * f32(1.0 / size)
    d = x - mean
    # torch.std uses Bessel's correction (divide by N-1).
    var = seg_sum(d * d) * f32(1.0 / (size - 1))
    denom = jnp.sqrt(var) + f32(eps)
    # Approx reciprocal on the (otherwise idle) EUP + one Newton-Raphson step
    # to recover ~f32 accuracy.
    r = pl.reciprocal(denom, approx=True)
    inv = r * (f32(2.0) - denom * r)
    a = a_ref[...].astype(f32)
    b = b_ref[...].astype(f32)
    o_ref[...] = (d * inv * a + b).astype(o_ref.dtype)


def _ln_rowwise_kernel(x_ref, a_ref, b_ref, o_ref, *, eps, size):
    """Generic fallback. x_ref: (TR, size); a_ref/b_ref: (1, size)."""
    f32 = jnp.float32
    x = x_ref[...].astype(f32)
    mean = jnp.mean(x, axis=-1, keepdims=True)
    d = x - mean
    var = jnp.sum(d * d, axis=-1, keepdims=True) / f32(size - 1)
    denom = jnp.sqrt(var) + f32(eps)
    r = pl.reciprocal(denom, approx=True)
    inv = r * (f32(2.0) - denom * r)       # one NR step -> ~f32 accuracy
    a = a_ref[...].astype(f32)
    b = b_ref[...].astype(f32)
    o_ref[...] = (d * inv * a + b).astype(o_ref.dtype)


def _tpu_vmem_bytes():
    """Best-effort trace-time VMEM capacity query; conservative fallback."""
    try:
        return int(getattr(pltpu.get_tpu_info(), "vmem_capacity_bytes"))
    except Exception:
        return 64 * 1024 * 1024            # assume v7x-class (smallest VMEM)


def _tile_rows(nrows, row_bytes_f32, max_rows, target_bytes, min_grid=4):
    """Largest sublane-aligned row tile with ~target_bytes (f32 working set)
    per block, while keeping >= min_grid blocks when rows allow (v7x 2-TC
    megacore sharding of the 'parallel' grid axis)."""
    want = min(max_rows, max(8, target_bytes // max(row_bytes_f32, 1)))
    align = 32 if want >= 32 else 8        # 32 covers f32/bf16/int8 packing
    want = max(8, (want // align) * align)
    if nrows <= want:
        return nrows                       # single block == full dim: legal
    if min_grid > 1 and nrows >= min_grid * 32:
        cand = -(-nrows // min_grid)       # ceil(nrows / min_grid)
        cand = -(-cand // 32) * 32         # keep sublane/packing alignment
        if cand < want:
            want = max(32, cand)
    return want


def layer_norm(x, a, b, eps=1e-6, max_tile_rows=8192, force_rowwise=False):
    """x: (..., size); a, b: (size,). Returns same shape/dtype as x."""
    size = x.shape[-1]
    orig_shape = x.shape
    x2 = x.reshape(-1, size)
    rows = x2.shape[0]

    vmem = _tpu_vmem_bytes()
    big_vmem = vmem >= (100 << 20)         # v5e/v6e: 128 MiB; v7x: 64 MiB/TC
    target_bytes = (4 << 20) if big_vmem else (2 << 20)
    vmem_limit = (64 << 20) if big_vmem else (32 << 20)

    compiler_params = pltpu.CompilerParams(
        dimension_semantics=("parallel",),  # lets v7x shard rows across TCs
        vmem_limit_bytes=vmem_limit,
    )

    pack = 128 // size if (1 < size <= 128 and 128 % size == 0) else 1
    use_packed = (not force_rowwise) and pack > 1

    if use_packed:
        # Pad by at most pack-1 rows so divisor sizes always take the
        # lane-dense path (no masked sub-128-lane stores).
        rows_p = pl.cdiv(rows, pack) * pack
        if rows_p != rows:
            x2 = jnp.pad(x2, ((0, rows_p - rows), (0, 0)))
        rp = rows_p // pack
        xp = x2.reshape(rp, 128)                      # free, contiguous reshape

        # Hoisted block-diagonal segment matrix: seg[i, j] = (i//size==j//size).
        ii = jnp.arange(128, dtype=jnp.int32)[:, None] // size
        jj = jnp.arange(128, dtype=jnp.int32)[None, :] // size
        seg = (ii == jj).astype(jnp.bfloat16)         # exact 0/1 in bf16

        ap = jnp.tile(a.reshape(1, size), (1, pack))  # (1, 128)
        bp = jnp.tile(b.reshape(1, size), (1, pack))

        tr = _tile_rows(rp, 128 * 4, max_tile_rows, target_bytes)
        out = pl.pallas_call(
            functools.partial(_ln_packed_kernel, eps=eps, size=size),
            out_shape=jax.ShapeDtypeStruct((rp, 128), x.dtype),
            grid_spec=pltpu.PrefetchScalarGridSpec(
                num_scalar_prefetch=0,
                grid=(pl.cdiv(rp, tr),),
                in_specs=[
                    pl.BlockSpec((tr, 128), lambda i: (i, 0)),
                    pl.BlockSpec((128, 128), lambda i: (0, 0)),
                    pl.BlockSpec((1, 128), lambda i: (0, 0)),
                    pl.BlockSpec((1, 128), lambda i: (0, 0)),
                ],
                out_specs=pl.BlockSpec((tr, 128), lambda i: (i, 0)),
            ),
            compiler_params=compiler_params,
        )(xp, seg, ap, bp)
        out = out.reshape(rows_p, size)
        if rows_p != rows:
            out = out[:rows]
        return out.reshape(orig_shape)

    # Generic fallback: any hidden size; hidden dim kept whole (full array dim).
    tr = _tile_rows(rows, size * 4, max_tile_rows, target_bytes)
    out = pl.pallas_call(
        functools.partial(_ln_rowwise_kernel, eps=eps, size=size),
        out_shape=jax.ShapeDtypeStruct((rows, size), x.dtype),
        grid_spec=pltpu.PrefetchScalarGridSpec(
            num_scalar_prefetch=0,
            grid=(pl.cdiv(rows, tr),),
            in_specs=[
                pl.BlockSpec((tr, size), lambda i: (i, 0)),
                pl.BlockSpec((1, size), lambda i: (0, 0)),
                pl.BlockSpec((1, size), lambda i: (0, 0)),
            ],
            out_specs=pl.BlockSpec((tr, size), lambda i: (i, 0)),
        ),
        compiler_params=compiler_params,
    )(x2, a.reshape(1, size), b.reshape(1, size))
    return out.reshape(orig_shape)


if __name__ == "__main__":
    def reference(x, a, b, eps):
        n = x.shape[-1]
        mean = jnp.mean(x, axis=-1, keepdims=True)
        std = jnp.sqrt(jnp.sum((x - mean) ** 2, axis=-1, keepdims=True) / (n - 1))
        return a * (x - mean) / (std + eps) + b

    key = jax.random.PRNGKey(0)
    k0, k1, k2, k3 = jax.random.split(key, 4)

    # Module: LayerNorm(size=32); input (batch=2, seq=8, hidden=32).
    size = 32
    x = jax.random.normal(k0, (2, 8, size), dtype=jnp.float32)
    a = jnp.ones((size,), dtype=jnp.float32)   # nn.Parameter(torch.ones(size))
    b = jnp.zeros((size,), dtype=jnp.float32)  # nn.Parameter(torch.zeros(size))

    out = jax.block_until_ready(layer_norm(x, a, b, eps=1e-6))
    ref = reference(x, a, b, 1e-6)
    assert out.shape == x.shape and out.dtype == x.dtype
    assert jnp.allclose(out, ref, atol=5e-5, rtol=5e-5), "packed path mismatch"

    # Also exercise the generic row-wise path on the same data.
    out_rw = jax.block_until_ready(layer_norm(x, a, b, eps=1e-6, force_rowwise=True))
    assert jnp.allclose(out_rw, ref, atol=5e-5, rtol=5e-5), "row-wise path mismatch"

    # Automatic fallback for a hidden size that does not divide 128.
    size2 = 96
    x2 = jax.random.normal(k1, (2, 8, size2), dtype=jnp.float32)
    a2 = jnp.ones((size2,), dtype=jnp.float32)
    b2 = jnp.zeros((size2,), dtype=jnp.float32)
    out2 = jax.block_until_ready(layer_norm(x2, a2, b2, eps=1e-6))
    ref2 = reference(x2, a2, b2, 1e-6)
    assert jnp.allclose(out2, ref2, atol=5e-5, rtol=5e-5), "fallback path mismatch"

    # Ragged last block: rp=10 rows with a forced 8-row tile -> 2 grid steps,
    # last block partially out-of-bounds (exercises masked writeback).
    x3 = jax.random.normal(k2, (5, 8, size), dtype=jnp.float32)
    out3 = jax.block_until_ready(layer_norm(x3, a, b, eps=1e-6, max_tile_rows=8))
    ref3 = reference(x3, a, b, 1e-6)
    assert jnp.allclose(out3, ref3, atol=5e-5, rtol=5e-5), "ragged block mismatch"

    # rows not a multiple of pack -> tiny pad keeps the lane-dense path.
    x4 = jax.random.normal(k3, (3, 3, size), dtype=jnp.float32)  # 9 rows, pack=4
    out4 = jax.block_until_ready(layer_norm(x4, a, b, eps=1e-6))
    ref4 = reference(x4, a, b, 1e-6)
    assert jnp.allclose(out4, ref4, atol=5e-5, rtol=5e-5), "padded rows mismatch"

    print("KERNEL_OK")
</pallas_src>

<mosaic_0001>
module attributes {stable_mosaic.version = 11 : i64} {
  func.func @_ln_packed_kernel(%arg0: i32, %arg1: memref<4x128xf32, #tpu.memory_space<vmem>>, %arg2: memref<128x128xbf16, #tpu.memory_space<vmem>>, %arg3: memref<1x128xf32, #tpu.memory_space<vmem>>, %arg4: memref<1x128xf32, #tpu.memory_space<vmem>>, %arg5: memref<4x128xf32, #tpu.memory_space<vmem>>) attributes {dimension_semantics = [#tpu.dimension_semantics<parallel>], iteration_bounds = array<i64: 1>, scalar_prefetch = 0 : i64, scratch_operands = 0 : i64, tpu.core_type = #tpu.core_type<tc>, window_params = [{transform_indices = @transform_0, window_bounds = array<i64: 4, 128>}, {pipeline_mode = #tpu.pipeline_mode<synchronous>, transform_indices = @transform_1, window_bounds = array<i64: 128, 128>}, {pipeline_mode = #tpu.pipeline_mode<synchronous>, transform_indices = @transform_2, window_bounds = array<i64: 1, 128>}, {pipeline_mode = #tpu.pipeline_mode<synchronous>, transform_indices = @transform_3, window_bounds = array<i64: 1, 128>}, {transform_indices = @transform_4, window_bounds = array<i64: 4, 128>}]} {
    %c0 = arith.constant 0 : index
    %c0_0 = arith.constant 0 : index
    %0 = vector.load %arg1[%c0, %c0_0] : memref<4x128xf32, #tpu.memory_space<vmem>>, vector<4x128xf32>
    %c0_1 = arith.constant 0 : index
    %c0_2 = arith.constant 0 : index
    %1 = vector.load %arg2[%c0_1, %c0_2] : memref<128x128xbf16, #tpu.memory_space<vmem>>, vector<128x128xbf16>
    %2 = arith.truncf %0 : vector<4x128xf32> to vector<4x128xbf16>
    %3 = arith.extf %2 : vector<4x128xbf16> to vector<4x128xf32>
    %4 = arith.subf %0, %3 : vector<4x128xf32>
    %5 = arith.truncf %4 : vector<4x128xf32> to vector<4x128xbf16>
    %cst = arith.constant dense<0.000000e+00> : vector<4x128xf32>
    %6 = tpu.matmul %2, %1, %cst {dimension_numbers = #tpu.dot_dimension_numbers<[1], [0], [0], [1], [0, 0, 1, 1], [], []>} : vector<4x128xbf16>, vector<128x128xbf16>, vector<4x128xf32> -> vector<4x128xf32>
    %cst_3 = arith.constant dense<0.000000e+00> : vector<4x128xf32>
    %7 = tpu.matmul %5, %1, %cst_3 {dimension_numbers = #tpu.dot_dimension_numbers<[1], [0], [0], [1], [0, 0, 1, 1], [], []>} : vector<4x128xbf16>, vector<128x128xbf16>, vector<4x128xf32> -> vector<4x128xf32>
    %8 = arith.addf %6, %7 : vector<4x128xf32>
    %cst_4 = arith.constant 3.125000e-02 : f32
    %9 = vector.broadcast %cst_4 : f32 to vector<4x128xf32>
    %10 = arith.mulf %8, %9 : vector<4x128xf32>
    %11 = arith.subf %0, %10 : vector<4x128xf32>
    %12 = arith.mulf %11, %11 : vector<4x128xf32>
    %13 = arith.truncf %12 : vector<4x128xf32> to vector<4x128xbf16>
    %14 = arith.extf %13 : vector<4x128xbf16> to vector<4x128xf32>
    %15 = arith.subf %12, %14 : vector<4x128xf32>
    %16 = arith.truncf %15 : vector<4x128xf32> to vector<4x128xbf16>
    %cst_5 = arith.constant dense<0.000000e+00> : vector<4x128xf32>
    %17 = tpu.matmul %13, %1, %cst_5 {dimension_numbers = #tpu.dot_dimension_numbers<[1], [0], [0], [1], [0, 0, 1, 1], [], []>} : vector<4x128xbf16>, vector<128x128xbf16>, vector<4x128xf32> -> vector<4x128xf32>
    %cst_6 = arith.constant dense<0.000000e+00> : vector<4x128xf32>
    %18 = tpu.matmul %16, %1, %cst_6 {dimension_numbers = #tpu.dot_dimension_numbers<[1], [0], [0], [1], [0, 0, 1, 1], [], []>} : vector<4x128xbf16>, vector<128x128xbf16>, vector<4x128xf32> -> vector<4x128xf32>
    %19 = arith.addf %17, %18 : vector<4x128xf32>
    %cst_7 = arith.constant 0.0322580636 : f32
    %20 = vector.broadcast %cst_7 : f32 to vector<4x128xf32>
    %21 = arith.mulf %19, %20 : vector<4x128xf32>
    %22 = math.sqrt %21 : vector<4x128xf32>
    %cst_8 = arith.constant 9.99999997E-7 : f32
    %23 = vector.broadcast %cst_8 : f32 to vector<4x128xf32>
    %24 = arith.addf %22, %23 : vector<4x128xf32>
    %25 = tpu.reciprocal %24 {approx = true} : vector<4x128xf32> -> vector<4x128xf32>
    %26 = arith.mulf %24, %25 : vector<4x128xf32>
    %cst_9 = arith.constant 2.000000e+00 : f32
    %27 = vector.broadcast %cst_9 : f32 to vector<4x128xf32>
    %28 = arith.subf %27, %26 : vector<4x128xf32>
    %29 = arith.mulf %25, %28 : vector<4x128xf32>
    %c0_10 = arith.constant 0 : index
    %c0_11 = arith.constant 0 : index
    %30 = vector.load %arg3[%c0_10, %c0_11] : memref<1x128xf32, #tpu.memory_space<vmem>>, vector<1x128xf32>
    %c0_12 = arith.constant 0 : index
    %c0_13 = arith.constant 0 : index
    %31 = vector.load %arg4[%c0_12, %c0_13] : memref<1x128xf32, #tpu.memory_space<vmem>>, vector<1x128xf32>
    %32 = arith.mulf %11, %29 : vector<4x128xf32>
    %33 = vector.broadcast %30 : vector<1x128xf32> to vector<4x128xf32>
    %34 = arith.mulf %32, %33 : vector<4x128xf32>
    %35 = vector.broadcast %31 : vector<1x128xf32> to vector<4x128xf32>
    %36 = arith.addf %34, %35 : vector<4x128xf32>
    %c0_14 = arith.constant 0 : index
    %c0_15 = arith.constant 0 : index
    %37 = vector.load %arg5[%c0_14, %c0_15] : memref<4x128xf32, #tpu.memory_space<vmem>>, vector<4x128xf32>
    tpu.vector_store %arg5[%c0_14, %c0_15], %36 {strides = array<i32>} : memref<4x128xf32, #tpu.memory_space<vmem>>, vector<4x128xf32>,
    return
  }
  func.func @transform_0(%arg0: i32) -> (i32, i32) {
    %c0_i32 = arith.constant 0 : i32
    %c0_i32_0 = arith.constant 0 : i32
    return %arg0, %c0_i32 : i32, i32
  }
  func.func @transform_1(%arg0: i32) -> (i32, i32) {
    %c0_i32 = arith.constant 0 : i32
    %c0_i32_0 = arith.constant 0 : i32
    %c0_i32_1 = arith.constant 0 : i32
    return %c0_i32, %c0_i32_0 : i32, i32
  }
  func.func @transform_2(%arg0: i32) -> (i32, i32) {
    %c0_i32 = arith.constant 0 : i32
    %c0_i32_0 = arith.constant 0 : i32
    %c0_i32_1 = arith.constant 0 : i32
    return %c0_i32, %c0_i32_0 : i32, i32
  }
  func.func @transform_3(%arg0: i32) -> (i32, i32) {
    %c0_i32 = arith.constant 0 : i32
    %c0_i32_0 = arith.constant 0 : i32
    %c0_i32_1 = arith.constant 0 : i32
    return %c0_i32, %c0_i32_0 : i32, i32
  }
  func.func @transform_4(%arg0: i32) -> (i32, i32) {
    %c0_i32 = arith.constant 0 : i32
    %c0_i32_0 = arith.constant 0 : i32
    return %arg0, %c0_i32 : i32, i32
  }
}

</mosaic_0001>

<llo_original>
// kernel: tpu_custom_call.1
$region0: #{tpu_custom_call.1}
  #allocation0 [shape = 'u32[]', space=smem, size = 0x4, offset = 0x4, fixed_abs, tag = 'smem constant byte address 0x4 - core index']
  #allocation1 [shape = 'u32[144,128]{1,0:T(1,128)}', space=vmem, size = 0x12000, scoped, tag = 'internal scratch']
  %s0 = inlined_call_operand.hbm [shape: f32[4,128], index: 0, kind: input, shape index: {}]
  %s1 = inlined_call_operand.hbm [shape: bf16[128,128], index: 1, kind: input, shape index: {}]
  %s2 = inlined_call_operand.vmem [shape: f32[1,128], index: 2, kind: input, shape index: {}]
  %s3 = inlined_call_operand.vmem [shape: f32[1,128], index: 3, kind: input, shape index: {}]
  %s4 = inlined_call_operand.hbm [shape: f32[4,128], index: 4, kind: output, shape index: {}]
  %s5 = sld [smem:[#allocation0]]
  $region34: #{tpu_custom_call.1} parent=0
    _
  %s7 = ssub.s32 1, %s5
  %s8 = scalar_select 0, %s7, %s5
  $region1: #{tpu_custom_call.1} parent=0
    #allocation2 [shape = 'u8[2048]{0}', space=vmem, size = 0x800, scoped, tag = 'input window, operand 0, single buffered']
    #allocation3 [shape = 's32[1]{0}', space=sflag, size = 0x4, scoped, tag = 'scoped memory for tpu_custom_call.1']
    #allocation4 [shape = 's32[1]{0}', space=sflag, size = 0x4, scoped, tag = 'scoped memory for tpu_custom_call.1']
    #allocation5 [shape = 'u8[32768]{0}', space=vmem, size = 0x8000, scoped, tag = 'input window, operand 1, single buffered']
    #allocation6 [shape = 's32[1]{0}', space=sflag, size = 0x4, scoped, tag = 'scoped memory for tpu_custom_call.1']
    #allocation7 [shape = 'u8[2048]{0}', space=vmem, size = 0x800, scoped, tag = 'output window, operand 0, single buffered']
    %9 = vsyncpa [#allocation3], 0
    %10 = vsyncpa [#allocation6], 0
    %11 = vsyncpa [#allocation4], 0
    // Predicated region
    $region2: #{tpu_custom_call.1} parent=1 // pred_check
      _
    $region3: #{tpu_custom_call.1} parent=1 // pred_check_branch
      %13 = sbr.rel (0) target = $region5
    $region4: #{tpu_custom_call.1} parent=1 // pred_region
      %s15 = ssub.s32 64, 64
      %16 = vsyncadd [#allocation3], %s15
      %s18 = sshll.u32 [#allocation2], 4
      %s19 = int_to_ptr.vmem [resolvable:$true] %s18
      %21 = dma.hbm_to_vmem [thread:$0]  %s0, 64, %s19, [#allocation3]
    $region5: #{tpu_custom_call.1} parent=1 // pred_fallthru
      _
    // Predicated region
    $region6: #{tpu_custom_call.1} parent=1 // pred_check
      _
    $region7: #{tpu_custom_call.1} parent=1 // pred_check_branch
      %23 = sbr.rel (0) target = $region9
    $region8: #{tpu_custom_call.1} parent=1 // pred_region
      %s25 = ssub.s32 1024, 1024
      %26 = vsyncadd [#allocation6], %s25
      %s27 = sshll.u32 [#allocation5], 4
      %s28 = int_to_ptr.vmem [resolvable:$true] %s27
      %33 = dma.hbm_to_vmem [thread:$0]  %s1, 1024, %s28, [#allocation6], 64, 64, 4
    $region9: #{tpu_custom_call.1} parent=1 // pred_fallthru
      _
    // Predicated region
    $region10: #{tpu_custom_call.1} parent=1 // pred_check
      _
    $region11: #{tpu_custom_call.1} parent=1 // pred_check_branch
      %35 = sbr.rel (0) target = $region13
    $region12: #{tpu_custom_call.1} parent=1 // pred_region
      _
    $region13: #{tpu_custom_call.1} parent=1 // pred_fallthru
      _
    // Predicated region
    $region14: #{tpu_custom_call.1} parent=1 // pred_check
      _
    $region15: #{tpu_custom_call.1} parent=1 // pred_check_branch
      %37 = sbr.rel (0) target = $region17
    $region16: #{tpu_custom_call.1} parent=1 // pred_region
      _
    $region17: #{tpu_custom_call.1} parent=1 // pred_fallthru
      _
    // Predicated region
    $region18: #{tpu_custom_call.1} parent=1 // pred_check
      _
    $region19: #{tpu_custom_call.1} parent=1 // pred_check_branch
      %39 = sbr.rel (0) target = $region21
    $region20: #{tpu_custom_call.1} parent=1 // pred_region
      %40 = dma.done [#allocation3], 64
    $region21: #{tpu_custom_call.1} parent=1 // pred_fallthru
      _
    // Predicated region
    $region22: #{tpu_custom_call.1} parent=1 // pred_check
      _
    $region23: #{tpu_custom_call.1} parent=1 // pred_check_branch
      %42 = sbr.rel (0) target = $region25
    $region24: #{tpu_custom_call.1} parent=1 // pred_region
      %43 = dma.done [#allocation6], 1024
    $region25: #{tpu_custom_call.1} parent=1 // pred_fallthru
      _
    %v45 = vld [vmem:[#allocation2] sm:$0xf]
    %v46 = vld [vmem:[#allocation5] sm:$0xf]
    %v47 = vld [vmem:[#allocation5 + $0x4] sm:$0xf]
    %v48 = vld [vmem:[#allocation5 + $0x8] sm:$0xf]
    %v49 = vld [vmem:[#allocation5 + $0xc] sm:$0xf]
    %v50 = vld [vmem:[#allocation5 + $0x10] sm:$0xf]
    %v51 = vld [vmem:[#allocation5 + $0x14] sm:$0xf]
    %v52 = vld [vmem:[#allocation5 + $0x18] sm:$0xf]
    %v53 = vld [vmem:[#allocation5 + $0x1c] sm:$0xf]
    %v54 = vld [vmem:[#allocation5 + $0x20] sm:$0xf]
    %v55 = vld [vmem:[#allocation5 + $0x24] sm:$0xf]
    %v56 = vld [vmem:[#allocation5 + $0x28] sm:$0xf]
    %v57 = vld [vmem:[#allocation5 + $0x2c] sm:$0xf]
    %v58 = vld [vmem:[#allocation5 + $0x30] sm:$0xf]
    %v59 = vld [vmem:[#allocation5 + $0x34] sm:$0xf]
    %v60 = vld [vmem:[#allocation5 + $0x38] sm:$0xf]
    %v61 = vld [vmem:[#allocation5 + $0x3c] sm:$0xf]
    %v62 = vpack.c.bf16 %v45, %v45
    %v63 = vunpack.c.l.bf16 %v62
    %v64 = vsub.f32 %v45, %v63
    %v65 = vpack.c.bf16 %v64, %v64
    %v82 = vunpack.c.l.b16 %v46
    %v83 = vunpack.c.l.b16 %v47
    %v84 = vunpack.c.l.b16 %v48
    %v85 = vunpack.c.l.b16 %v49
    %v86 = vunpack.c.l.b16 %v50
    %v87 = vunpack.c.l.b16 %v51
    %v88 = vunpack.c.l.b16 %v52
    %v89 = vunpack.c.l.b16 %v53
    %v90 = vunpack.c.l.b16 %v54
    %v91 = vunpack.c.l.b16 %v55
    %v92 = vunpack.c.l.b16 %v56
    %v93 = vunpack.c.l.b16 %v57
    %v94 = vunpack.c.l.b16 %v58
    %v95 = vunpack.c.l.b16 %v59
    %v96 = vunpack.c.l.b16 %v60
    %v97 = vunpack.c.l.b16 %v61
    %v98 = vpack.c.b16 %v83, %v82
    %v99 = vpack.c.b16 %v85, %v84
    %v100 = vpack.c.b16 %v87, %v86
    %v101 = vpack.c.b16 %v89, %v88
    %v102 = vpack.c.b16 %v91, %v90
    %v103 = vpack.c.b16 %v93, %v92
    %v104 = vpack.c.b16 %v95, %v94
    %v105 = vpack.c.b16 %v97, %v96
    %114 = vmatprep.subr.bf16.mxu0 0
    %115 = vmatpush1.bf16.msra.mxu0 %v98
    %116 = vmatprep.subr.bf16.mxu0 0
    %117 = vmatpush1.bf16.msra.mxu0 %v99
    %118 = vmatprep.subr.bf16.mxu0 0
    %119 = vmatpush1.bf16.msra.mxu0 %v100
    %120 = vmatprep.subr.bf16.mxu0 0
    %121 = vmatpush1.bf16.msra.mxu0 %v101
    %122 = vmatprep.subr.bf16.mxu0 0
    %123 = vmatpush1.bf16.msra.mxu0 %v102
    %124 = vmatprep.subr.bf16.mxu0 0
    %125 = vmatpush1.bf16.msra.mxu0 %v103
    %126 = vmatprep.subr.bf16.mxu0 0
    %127 = vmatpush1.bf16.msra.mxu0 %v104
    %128 = vmatprep.subr.bf16.mxu0 0
    %129 = vmatpush1.bf16.msra.mxu0 %v105
    %130 = vmatprep.subr.bf16.mxu0 0
    %131 = vmatpush1.bf16.msra.mxu0 0
    %132 = vmatprep.subr.bf16.mxu0 0
    %133 = vmatpush1.bf16.msra.mxu0 0
    %134 = vmatprep.subr.bf16.mxu0 0
    %135 = vmatpush1.bf16.msra.mxu0 0
    %136 = vmatprep.subr.bf16.mxu0 0
    %137 = vmatpush1.bf16.msra.mxu0 0
    %138 = vmatprep.subr.bf16.mxu0 0
    %139 = vmatpush1.bf16.msra.mxu0 0
    %140 = vmatprep.subr.bf16.mxu0 0
    %141 = vmatpush1.bf16.msra.mxu0 0
    %142 = vmatprep.subr.bf16.mxu0 0
    %143 = vmatpush1.bf16.msra.mxu0 0
    %144 = vmatprep.subr.bf16.mxu0 0
    %145 = vmatpush1.bf16.msra.mxu0 0
    %146 = vmatprep.mubr.bf16.mxu0 0
    %147 = vmatmul.mubr.bf16.gmra.mrb[0].mxu0 %v65
    %v148 = vpop.f32.mrb[0].mxu0
    %v149 = vadd.f32 0.0, %v148
    %v150 = vpop.f32.mrb[0].mxu0
    %v151 = vpop.f32.mrb[0].mxu0
    %v152 = vpop.f32.mrb[0].mxu0
    %153 = vdwg.mxu0
    %154 = vmatprep.subr.bf16.mxu0 0
    %155 = vmatpush1.bf16.msra.mxu0 %v98
    %156 = vmatprep.subr.bf16.mxu0 0
    %157 = vmatpush1.bf16.msra.mxu0 %v99
    %158 = vmatprep.subr.bf16.mxu0 0
    %159 = vmatpush1.bf16.msra.mxu0 %v100
    %160 = vmatprep.subr.bf16.mxu0 0
    %161 = vmatpush1.bf16.msra.mxu0 %v101
    %162 = vmatprep.subr.bf16.mxu0 0
    %163 = vmatpush1.bf16.msra.mxu0 %v102
    %164 = vmatprep.subr.bf16.mxu0 0
    %165 = vmatpush1.bf16.msra.mxu0 %v103
    %166 = vmatprep.subr.bf16.mxu0 0
    %167 = vmatpush1.bf16.msra.mxu0 %v104
    %168 = vmatprep.subr.bf16.mxu0 0
    %169 = vmatpush1.bf16.msra.mxu0 %v105
    %170 = vmatprep.subr.bf16.mxu0 0
    %171 = vmatpush1.bf16.msra.mxu0 0
    %172 = vmatprep.subr.bf16.mxu0 0
    %173 = vmatpush1.bf16.msra.mxu0 0
    %174 = vmatprep.subr.bf16.mxu0 0
    %175 = vmatpush1.bf16.msra.mxu0 0
    %176 = vmatprep.subr.bf16.mxu0 0
    %177 = vmatpush1.bf16.msra.mxu0 0
    %178 = vmatprep.subr.bf16.mxu0 0
    %179 = vmatpush1.bf16.msra.mxu0 0
    %180 = vmatprep.subr.bf16.mxu0 0
    %181 = vmatpush1.bf16.msra.mxu0 0
    %182 = vmatprep.subr.bf16.mxu0 0
    %183 = vmatpush1.bf16.msra.mxu0 0
    %184 = vmatprep.subr.bf16.mxu0 0
    %185 = vmatpush1.bf16.msra.mxu0 0
    %186 = vmatprep.mubr.bf16.mxu0 0
    %187 = vmatmul.mubr.bf16.gmra.mrb[0].mxu0 %v62
    %v188 = vpop.f32.mrb[0].mxu0
    %v189 = vadd.f32 %v149, %v188
    %v190 = vpop.f32.mrb[0].mxu0
    %v191 = vpop.f32.mrb[0].mxu0
    %v192 = vpop.f32.mrb[0].mxu0
    %193 = vdwg.mxu0
    %v194 = vmul.f32 %v189, 0.03125
    %v195 = vsub.f32 %v45, %v194
    %v196 = vmul.f32 %v195, %v195
    %v197 = vpack.c.bf16 %v196, %v196
    %v198 = vunpack.c.l.bf16 %v197
    %v199 = vsub.f32 %v196, %v198
    %v200 = vpack.c.bf16 %v199, %v199
    %201 = vmatprep.subr.bf16.mxu0 0
    %202 = vmatpush1.bf16.msra.mxu0 %v98
    %203 = vmatprep.subr.bf16.mxu0 0
    %204 = vmatpush1.bf16.msra.mxu0 %v99
    %205 = vmatprep.subr.bf16.mxu0 0
    %206 = vmatpush1.bf16.msra.mxu0 %v100
    %207 = vmatprep.subr.bf16.mxu0 0
    %208 = vmatpush1.bf16.msra.mxu0 %v101
    %209 = vmatprep.subr.bf16.mxu0 0
    %210 = vmatpush1.bf16.msra.mxu0 %v102
    %211 = vmatprep.subr.bf16.mxu0 0
    %212 = vmatpush1.bf16.msra.mxu0 %v103
    %213 = vmatprep.subr.bf16.mxu0 0
    %214 = vmatpush1.bf16.msra.mxu0 %v104
    %215 = vmatprep.subr.bf16.mxu0 0
    %216 = vmatpush1.bf16.msra.mxu0 %v105
    %217 = vmatprep.subr.bf16.mxu0 0
    %218 = vmatpush1.bf16.msra.mxu0 0
    %219 = vmatprep.subr.bf16.mxu0 0
    %220 = vmatpush1.bf16.msra.mxu0 0
    %221 = vmatprep.subr.bf16.mxu0 0
    %222 = vmatpush1.bf16.msra.mxu0 0
    %223 = vmatprep.subr.bf16.mxu0 0
    %224 = vmatpush1.bf16.msra.mxu0 0
    %225 = vmatprep.subr.bf16.mxu0 0
    %226 = vmatpush1.bf16.msra.mxu0 0
    %227 = vmatprep.subr.bf16.mxu0 0
    %228 = vmatpush1.bf16.msra.mxu0 0
    %229 = vmatprep.subr.bf16.mxu0 0
    %230 = vmatpush1.bf16.msra.mxu0 0
    %231 = vmatprep.subr.bf16.mxu0 0
    %232 = vmatpush1.bf16.msra.mxu0 0
    %233 = vmatprep.mubr.bf16.mxu0 0
    %234 = vmatmul.mubr.bf16.gmra.mrb[0].mxu0 %v200
    %v235 = vpop.f32.mrb[0].mxu0
    %v236 = vadd.f32 0.0, %v235
    %v237 = vpop.f32.mrb[0].mxu0
    %v238 = vpop.f32.mrb[0].mxu0
    %v239 = vpop.f32.mrb[0].mxu0
    %240 = vdwg.mxu0
    %241 = vmatprep.subr.bf16.mxu0 0
    %242 = vmatpush1.bf16.msra.mxu0 %v98
    %243 = vmatprep.subr.bf16.mxu0 0
    %244 = vmatpush1.bf16.msra.mxu0 %v99
    %245 = vmatprep.subr.bf16.mxu0 0
    %246 = vmatpush1.bf16.msra.mxu0 %v100
    %247 = vmatprep.subr.bf16.mxu0 0
    %248 = vmatpush1.bf16.msra.mxu0 %v101
    %249 = vmatprep.subr.bf16.mxu0 0
    %250 = vmatpush1.bf16.msra.mxu0 %v102
    %251 = vmatprep.subr.bf16.mxu0 0
    %252 = vmatpush1.bf16.msra.mxu0 %v103
    %253 = vmatprep.subr.bf16.mxu0 0
    %254 = vmatpush1.bf16.msra.mxu0 %v104
    %255 = vmatprep.subr.bf16.mxu0 0
    %256 = vmatpush1.bf16.msra.mxu0 %v105
    %257 = vmatprep.subr.bf16.mxu0 0
    %258 = vmatpush1.bf16.msra.mxu0 0
    %259 = vmatprep.subr.bf16.mxu0 0
    %260 = vmatpush1.bf16.msra.mxu0 0
    %261 = vmatprep.subr.bf16.mxu0 0
    %262 = vmatpush1.bf16.msra.mxu0 0
    %263 = vmatprep.subr.bf16.mxu0 0
    %264 = vmatpush1.bf16.msra.mxu0 0
    %265 = vmatprep.subr.bf16.mxu0 0
    %266 = vmatpush1.bf16.msra.mxu0 0
    %267 = vmatprep.subr.bf16.mxu0 0
    %268 = vmatpush1.bf16.msra.mxu0 0
    %269 = vmatprep.subr.bf16.mxu0 0
    %270 = vmatpush1.bf16.msra.mxu0 0
    %271 = vmatprep.subr.bf16.mxu0 0
    %272 = vmatpush1.bf16.msra.mxu0 0
    %273 = vmatprep.mubr.bf16.mxu0 0
    %274 = vmatmul.mubr.bf16.gmra.mrb[0].mxu0 %v197
    %v275 = vpop.f32.mrb[0].mxu0
    %v276 = vadd.f32 %v236, %v275
    %v277 = vpop.f32.mrb[0].mxu0
    %v278 = vpop.f32.mrb[0].mxu0
    %v279 = vpop.f32.mrb[0].mxu0
    %280 = vdwg.mxu0
    %v281 = vmul.f32 %v276, 0.032258064
    %v282 = vrsqrt.pop %v281
    %v283 = vmul.f32 %v281, %v282
    %vm284 = vcmp.eq.f32.partialorder %v281, inf
    %v285 = vsel %vm284, %v281, %v283
    %vm286 = vcmp.eq.f32.partialorder %v281, 0.0
    %v287 = vand.u32 %v281, 2147483648
    %v288 = vsel %vm286, %v287, %v285
    %v289 = vadd.f32 %v288, 1e-06
    %v290 = vrcp.pop %v289
    %v291 = vmul.f32 %v289, %v290
    %v292 = vsub.f32 2.0, %v291
    %v293 = vmul.f32 %v290, %v292
    %v294 = vld [vmem:[%s2] sm:$0x1]
    %v295 = vld [vmem:[%s3] sm:$0x1]
    %v296 = vmul.f32 %v195, %v293
    %v298 = vlaneseq
    %v299 = vshrl.u32 %v298, 7
    %v300 = vsub.s32 0, %v299
    %v301 = vrot.slane %v294, %v300
    %v303 = vmul.f32 %v296, %v301
    %v305 = vlaneseq
    %v306 = vshrl.u32 %v305, 7
    %v307 = vsub.s32 0, %v306
    %v308 = vrot.slane %v295, %v307
    %v310 = vadd.f32 %v303, %v308
    %311 = vst [vmem:[#allocation7] sm:$0xf] %v310
    // Predicated region
    $region26: #{tpu_custom_call.1} parent=1 // pred_check
      _
    $region27: #{tpu_custom_call.1} parent=1 // pred_check_branch
      %313 = sbr.rel (0) target = $region29
    $region28: #{tpu_custom_call.1} parent=1 // pred_region
      %s315 = ssub.s32 64, 64
      %316 = vsyncadd [#allocation4], %s315
      %s318 = sshll.u32 [#allocation7], 4
      %s319 = int_to_ptr.vmem [resolvable:$true] %s318
      %321 = dma.vmem_to_hbm [thread:$0]  %s319, 64, %s4, [#allocation4]
    $region29: #{tpu_custom_call.1} parent=1 // pred_fallthru
      _
    // Predicated region
    $region30: #{tpu_custom_call.1} parent=1 // pred_check
      _
    $region31: #{tpu_custom_call.1} parent=1 // pred_check_branch
      %323 = sbr.rel (0) target = $region33
    $region32: #{tpu_custom_call.1} parent=1 // pred_region
      %324 = dma.done [#allocation4], 64
    $region33: #{tpu_custom_call.1} parent=1 // pred_fallthru
      _
    %325 = vsyncpa [#allocation3], 1
    %326 = vsyncpa [#allocation6], 1
    %327 = vsyncpa [#allocation4], 1

</llo_original>
